<compile_context>
chip_gen: v5e
topology: v5e:2x2
jax: 0.10.0
libtpu: 0.0.40
codegen_flags: <defaults>
</compile_context>

<pallas_src>
import functools
import math

import jax
import jax.numpy as jnp
from jax import lax
from jax.experimental import pallas as pl
from jax.experimental.pallas import tpu as pltpu


def _classifier_kernel(*refs, has_bias, has_scales, k_tiled):
    # refs = (x_ref, w_ref, [b_ref], [s_ref], o_ref, [acc_ref])
    x_ref, w_ref = refs[0], refs[1]
    idx = 2
    b_ref = refs[idx] if has_bias else None
    idx += int(has_bias)
    s_ref = refs[idx] if has_scales else None
    idx += int(has_scales)
    o_ref = refs[idx]
    acc_ref = refs[idx + 1] if k_tiled else None

    # MXU matmul, contraction over the last axis of both operands (NT layout,
    # no transpose of the weight tile).
    part = lax.dot_general(
        x_ref[...],                      # [tn, tk] bf16
        w_ref[...],                      # [tc, tk] bf16
        dimension_numbers=(((1,), (1,)), ((), ())),
        preferred_element_type=jnp.float32,
    )                                    # [tn, tc] f32

    def epilogue(acc):
        if has_bias:
            acc = acc + b_ref[...]       # broadcast [1, tc]
        if has_scales:
            acc = acc * s_ref[...]       # broadcast [1, tc]
        o_ref[...] = acc.astype(o_ref.dtype)

    if not k_tiled:
        # D kept whole: single MXU pass per tile, no accumulator needed.
        epilogue(part)
    else:
        k = pl.program_id(2)

        @pl.when(k == 0)
        def _():
            acc_ref[...] = jnp.zeros_like(acc_ref)

        acc_ref[...] += part

        @pl.when(k == pl.num_programs(2) - 1)
        def _():
            epilogue(acc_ref[...])


def _cdiv(a, b):
    return -(-a // b)


def _round_up(a, b):
    return _cdiv(a, b) * b


def _balanced_tile(n, cap, gran):
    """Largest tile <= cap (multiple of gran) that splits n into balanced
    tiles, minimizing padding waste (< 1 tile instead of up to ~2x)."""
    cap = max(gran, (cap // gran) * gran)
    if n <= gran:
        return gran
    g = _cdiv(n, cap)                 # number of tiles at the cap
    return _round_up(_cdiv(n, g), gran)


def dot_product_classifier(
    x, weight, bias=None, scales=None, *,
    tn_cap=256, tc_cap=256,
    vmem_budget_bytes=40 * (1 << 20),
    resident_weight_bytes=8 * (1 << 20),
    small_problem_flops=1 << 22,
    force_pallas=False,
):
    """x: [N, D] f32, weight: [C, D] f32, bias/scales: [C] f32 or None.
    Returns [N, C] f32."""
    N, D = x.shape
    C, Dw = weight.shape
    assert D == Dw

    has_bias = bias is not None
    has_scales = scales is not None

    # --- tiny-problem fallback: pad/slice + launch overhead would dominate.
    if not force_pallas and 2 * N * C * D < small_problem_flops:
        out = x @ weight.T
        if has_bias:
            out = out + bias
        if has_scales:
            out = out * scales
        return out.astype(jnp.float32)

    # --- bf16 MXU inputs (f32 accumulation in-kernel).
    x_bf = x.astype(jnp.bfloat16)
    w_bf = weight.astype(jnp.bfloat16)

    # --- balanced tiles: rows multiple of 16 (bf16 sublanes), classes of 128.
    tn = _balanced_tile(N, tn_cap, 16)
    tc = _balanced_tile(C, tc_cap, 128)

    # --- keep the weight VMEM-resident (single class tile, constant index_map)
    #     when the padded weight is small: it is then DMA'd exactly once.
    c_pad_full = _round_up(C, 128)
    if 2 * c_pad_full * D * 2 <= resident_weight_bytes:   # 2 bufs x bf16
        tc = c_pad_full

    # --- v7x megacore: make sure at least one parallel axis has >= 2 blocks.
    if _cdiv(N, tn) * _cdiv(C, tc) == 1 and N > 16:
        tn = _round_up(_cdiv(N, 2), 16)

    n_pad = _round_up(N, tn)
    c_pad = _round_up(C, tc)

    # --- VMEM budget: keep D whole if the working set fits, else K-tile.
    def step_bytes(tk):
        b = 2 * tn * tk * 2            # x blocks, double-buffered, bf16
        b += 2 * tc * tk * 2           # w blocks, double-buffered, bf16
        b += 2 * tn * tc * 4           # output blocks, f32
        b += tn * tc * 4               # accumulator scratch (worst case)
        if has_bias:
            b += 2 * c_pad * 4
        if has_scales:
            b += 2 * c_pad * 4
        return b

    if step_bytes(D) <= vmem_budget_bytes:
        tk, d_pad, k_tiled = D, D, False
    else:
        fixed = step_bytes(0)
        avail = max(vmem_budget_bytes - fixed, 4 * (tn + tc) * 128)
        tk = max(128, (avail // (4 * (tn + tc))) // 128 * 128)
        d_pad = _round_up(D, tk)
        k_tiled = True

    # --- pad operands (zero padding is exact for the dot / bias / scales).
    x_p = x_bf
    if n_pad != N or d_pad != D:
        x_p = jnp.pad(x_bf, ((0, n_pad - N), (0, d_pad - D)))
    w_p = w_bf
    if c_pad != C or d_pad != D:
        w_p = jnp.pad(w_bf, ((0, c_pad - C), (0, d_pad - D)))

    operands = [x_p, w_p]
    in_specs = [
        pl.BlockSpec((tn, tk), lambda i, j, k: (i, k)),   # x row tile
        pl.BlockSpec((tc, tk), lambda i, j, k: (j, k)),   # weight class tile
    ]

    def _vec_spec():
        if tc == c_pad:   # fully resident, DMA'd once
            return pl.BlockSpec((1, c_pad), lambda i, j, k: (0, 0))
        return pl.BlockSpec((1, tc), lambda i, j, k: (0, j))

    if has_bias:
        b_p = bias.astype(jnp.float32)
        if c_pad != C:
            b_p = jnp.pad(b_p, (0, c_pad - C))
        operands.append(b_p.reshape(1, c_pad))
        in_specs.append(_vec_spec())
    if has_scales:
        s_p = scales.astype(jnp.float32)
        if c_pad != C:
            s_p = jnp.pad(s_p, (0, c_pad - C))
        operands.append(s_p.reshape(1, c_pad))
        in_specs.append(_vec_spec())

    est = step_bytes(tk)
    vmem_limit = int(min(60 * (1 << 20), max(32 * (1 << 20), est + (8 << 20))))

    kernel = functools.partial(
        _classifier_kernel,
        has_bias=has_bias, has_scales=has_scales, k_tiled=k_tiled,
    )

    out = pl.pallas_call(
        kernel,
        out_shape=jax.ShapeDtypeStruct((n_pad, c_pad), jnp.float32),
        grid=(n_pad // tn, c_pad // tc, d_pad // tk),
        in_specs=in_specs,
        out_specs=pl.BlockSpec((tn, tc), lambda i, j, k: (i, j)),
        scratch_shapes=([pltpu.VMEM((tn, tc), jnp.float32)] if k_tiled else []),
        compiler_params=pltpu.CompilerParams(
            dimension_semantics=("parallel", "parallel", "arbitrary"),
            vmem_limit_bytes=vmem_limit,
        ),
    )(*operands)

    # Strip padding.
    return out[:N, :C]


def _reference(x, weight, bias, scales):
    out = x @ weight.T
    if bias is not None:
        out = out + bias
    if scales is not None:
        out = out * scales
    return out


if __name__ == "__main__":
    # Module hyper-parameters (small, synthetic; intentionally not 8/128
    # aligned so the padding / tiling paths are exercised).
    in_dims = 384
    num_class = 160
    N = 300  # batch of relation features

    key = jax.random.PRNGKey(0)
    kx, kw, kb, ks = jax.random.split(key, 4)

    # Parameter init mirroring reset_parameters():
    #   kaiming_uniform_(a=sqrt(5)) -> U(-1/sqrt(fan_in), 1/sqrt(fan_in));
    #   bias ~ U(-1/sqrt(fan_in), 1/sqrt(fan_in)).
    bound = 1.0 / math.sqrt(in_dims)
    weight = jax.random.uniform(
        kw, (num_class, in_dims), minval=-bound, maxval=bound, dtype=jnp.float32
    )
    bias = jax.random.uniform(
        kb, (num_class,), minval=-bound, maxval=bound, dtype=jnp.float32
    )
    # learnable_scale=True path (init is ones; perturb so the path is exercised).
    scales = 1.0 + 0.1 * jax.random.uniform(ks, (num_class,), dtype=jnp.float32)

    x = jax.random.normal(kx, (N, in_dims), dtype=jnp.float32)

    ref = _reference(x, weight, bias, scales)

    # 1) Main Pallas path (D kept whole, weight resident).
    out = dot_product_classifier(x, weight, bias=bias, scales=scales,
                                 force_pallas=True)
    out = jax.block_until_ready(out)
    assert out.shape == (N, num_class)
    assert jnp.allclose(out, ref, atol=5e-2, rtol=5e-2), float(
        jnp.max(jnp.abs(out - ref)))

    # 2) Force the K-tiled (accumulator) path with a tiny VMEM budget.
    out_kt = dot_product_classifier(x, weight, bias=bias, scales=scales,
                                    force_pallas=True,
                                    vmem_budget_bytes=1 << 20)
    out_kt = jax.block_until_ready(out_kt)
    assert jnp.allclose(out_kt, out, atol=1e-3, rtol=1e-3), float(
        jnp.max(jnp.abs(out_kt - out)))

    # 3) Tiny-problem fallback (plain XLA dot, full f32).
    out_small = dot_product_classifier(x[:8], weight, bias=bias, scales=scales)
    out_small = jax.block_until_ready(out_small)
    assert jnp.allclose(out_small, ref[:8], atol=1e-5, rtol=1e-5)

    # TODO(synk): fix_weights()/requires_grad and the cfg-driven weight freeze
    # are training-time concerns with no forward-pass Pallas equivalent.
    print("KERNEL_OK")
</pallas_src>

<mosaic_0001>
module attributes {stable_mosaic.version = 11 : i64} {
  func.func @_classifier_kernel(%arg0: i32, %arg1: i32, %arg2: i32, %arg3: memref<160x384xbf16, #tpu.memory_space<vmem>>, %arg4: memref<256x384xbf16, #tpu.memory_space<vmem>>, %arg5: memref<1x256xf32, #tpu.memory_space<vmem>>, %arg6: memref<1x256xf32, #tpu.memory_space<vmem>>, %arg7: memref<160x256xf32, #tpu.memory_space<vmem>>) attributes {dimension_semantics = [#tpu.dimension_semantics<parallel>, #tpu.dimension_semantics<parallel>, #tpu.dimension_semantics<arbitrary>], iteration_bounds = array<i64: 2, 1, 1>, scalar_prefetch = 0 : i64, scratch_operands = 0 : i64, tpu.core_type = #tpu.core_type<tc>, window_params = [{transform_indices = @transform_0, window_bounds = array<i64: 160, 384>}, {transform_indices = @transform_1, window_bounds = array<i64: 256, 384>}, {pipeline_mode = #tpu.pipeline_mode<synchronous>, transform_indices = @transform_2, window_bounds = array<i64: 1, 256>}, {pipeline_mode = #tpu.pipeline_mode<synchronous>, transform_indices = @transform_3, window_bounds = array<i64: 1, 256>}, {transform_indices = @transform_4, window_bounds = array<i64: 160, 256>}]} {
    %c0 = arith.constant 0 : index
    %c0_0 = arith.constant 0 : index
    %0 = vector.load %arg3[%c0, %c0_0] : memref<160x384xbf16, #tpu.memory_space<vmem>>, vector<160x384xbf16>
    %c0_1 = arith.constant 0 : index
    %c0_2 = arith.constant 0 : index
    %1 = vector.load %arg4[%c0_1, %c0_2] : memref<256x384xbf16, #tpu.memory_space<vmem>>, vector<256x384xbf16>
    %cst = arith.constant dense<0.000000e+00> : vector<160x256xf32>
    %2 = tpu.matmul %0, %1, %cst {dimension_numbers = #tpu.dot_dimension_numbers<[1], [1], [0], [0], [0, 0, 1, 0], [], []>} : vector<160x384xbf16>, vector<256x384xbf16>, vector<160x256xf32> -> vector<160x256xf32>
    %c0_3 = arith.constant 0 : index
    %c0_4 = arith.constant 0 : index
    %3 = vector.load %arg5[%c0_3, %c0_4] : memref<1x256xf32, #tpu.memory_space<vmem>>, vector<1x256xf32>
    %4 = vector.broadcast %3 : vector<1x256xf32> to vector<160x256xf32>
    %5 = arith.addf %2, %4 : vector<160x256xf32>
    %c0_5 = arith.constant 0 : index
    %c0_6 = arith.constant 0 : index
    %6 = vector.load %arg6[%c0_5, %c0_6] : memref<1x256xf32, #tpu.memory_space<vmem>>, vector<1x256xf32>
    %7 = vector.broadcast %6 : vector<1x256xf32> to vector<160x256xf32>
    %8 = arith.mulf %5, %7 : vector<160x256xf32>
    %c0_7 = arith.constant 0 : index
    %c0_8 = arith.constant 0 : index
    %9 = vector.load %arg7[%c0_7, %c0_8] : memref<160x256xf32, #tpu.memory_space<vmem>>, vector<160x256xf32>
    tpu.vector_store %arg7[%c0_7, %c0_8], %8 {strides = array<i32>} : memref<160x256xf32, #tpu.memory_space<vmem>>, vector<160x256xf32>,
    return
  }
  func.func @transform_0(%arg0: i32, %arg1: i32, %arg2: i32) -> (i32, i32) {
    %c0_i32 = arith.constant 0 : i32
    return %arg0, %arg2 : i32, i32
  }
  func.func @transform_1(%arg0: i32, %arg1: i32, %arg2: i32) -> (i32, i32) {
    %c0_i32 = arith.constant 0 : i32
    return %arg1, %arg2 : i32, i32
  }
  func.func @transform_2(%arg0: i32, %arg1: i32, %arg2: i32) -> (i32, i32) {
    %c0_i32 = arith.constant 0 : i32
    %c0_i32_0 = arith.constant 0 : i32
    %c0_i32_1 = arith.constant 0 : i32
    return %c0_i32, %c0_i32_0 : i32, i32
  }
  func.func @transform_3(%arg0: i32, %arg1: i32, %arg2: i32) -> (i32, i32) {
    %c0_i32 = arith.constant 0 : i32
    %c0_i32_0 = arith.constant 0 : i32
    %c0_i32_1 = arith.constant 0 : i32
    return %c0_i32, %c0_i32_0 : i32, i32
  }
  func.func @transform_4(%arg0: i32, %arg1: i32, %arg2: i32) -> (i32, i32) {
    %c0_i32 = arith.constant 0 : i32
    return %arg0, %arg1 : i32, i32
  }
}

</mosaic_0001>

<llo_original>
// kernel: tpu_custom_call.1
$region0: #{tpu_custom_call.1}
  #allocation0 [shape = 'u32[]', space=smem, size = 0x4, offset = 0x4, fixed_abs, tag = 'smem constant byte address 0x4 - core index']
  #allocation1 [shape = 'u32[72,128]{1,0:T(1,128)}', space=vmem, size = 0x9000, scoped, tag = 'internal scratch']
  %s0 = inlined_call_operand.hbm [shape: bf16[320,384], index: 0, kind: input, shape index: {}]
  %s1 = inlined_call_operand.hbm [shape: bf16[256,384], index: 1, kind: input, shape index: {}]
  %s2 = inlined_call_operand.hbm [shape: f32[1,256], index: 2, kind: input, shape index: {}]
  %s3 = inlined_call_operand.vmem [shape: f32[1,256], index: 3, kind: input, shape index: {}]
  %s4 = inlined_call_operand.hbm [shape: f32[320,256], index: 4, kind: output, shape index: {}]
  %s5 = sld [smem:[#allocation0]]
  $region61: #{tpu_custom_call.1} parent=0
    _
  %s7 = ssub.s32 1, %s5
  %s8 = scalar_select 0, %s7, %s5
  $region1: #{tpu_custom_call.1} parent=0
    #allocation2 [shape = 'u8[245760]{0}', space=vmem, size = 0x3c000, scoped, tag = 'input window, operand 0']
    #allocation3 [shape = 's32[2]{0}', space=sflag, size = 0x8, scoped, tag = 'scoped memory for tpu_custom_call.1']
    #allocation4 [shape = 's32[2]{0}', space=sflag, size = 0x8, scoped, tag = 'scoped memory for tpu_custom_call.1']
    #allocation5 [shape = 'u8[196608]{0}', space=vmem, size = 0x30000, scoped, tag = 'input window, operand 1, single buffered']
    #allocation6 [shape = 's32[1]{0}', space=sflag, size = 0x4, scoped, tag = 'scoped memory for tpu_custom_call.1']
    #allocation7 [shape = 'u8[1024]{0}', space=vmem, size = 0x400, scoped, tag = 'input window, operand 2, single buffered']
    #allocation8 [shape = 'u8[327680]{0}', space=vmem, size = 0x50000, scoped, tag = 'output window, operand 0']
    %9 = vsyncpa [#allocation3], 0
    %s10 = scalar_lea.sflag [#allocation3], 1
    %11 = vsyncpa %s10, 0
    %12 = vsyncpa [#allocation6], 0
    %13 = vsyncpa [#allocation4], 0
    %s14 = scalar_lea.sflag [#allocation4], 1
    %15 = vsyncpa %s14, 0
    loop: start=0, step=1, limit=4
    $region2: #{tpu_custom_call.1} parent=1 // loop_pre_header
      _
    $region3: #{tpu_custom_call.1} parent=1 // loop_header
      %s17 = sphi 0, %s21
      %p18 = scmp.ge.s32.totalorder %s17, 4
      %s24 = sphi 0, %s43
      %s25 = sphi 0, %s39
      %s26 = sphi 0, %s35
      %s27 = sphi 0, %s24
      %s28 = sphi 0, %s25
      %s29 = sphi 0, %s26
      %s30 = sphi 0, %s27
      %s31 = sphi 0, %s28
      %s32 = sphi 0, %s29
      %s48 = sphi 0, %s50
      %s51 = sphi 0, %s48
      %s52 = sphi 0, %s51
      %s68 = sphi 0, %s52
      %s76 = sphi 0, %s78
      %s79 = sphi 0, %s76
      %s80 = sphi 0, %s79
      %s96 = sphi 0, %s80
      %s100 = sphi 0, %s100
      %s102 = sphi 0, %s100
      %s103 = sphi 0, %s102
      %s117 = sphi 0, %s103
      %s121 = sphi 0, %s121
      %s123 = sphi 0, %s121
      %s124 = sphi 0, %s123
      %s138 = sphi 0, %s124
      %s146 = sphi 0, %s148
      %s149 = sphi 0, %s146
      %s150 = sphi 0, %s149
      %s166 = sphi 0, %s150
    $region4: #{tpu_custom_call.1} parent=1 // loop_header_branch
      %20 = sbr.rel (%p18) target = $region8
    $region5: #{tpu_custom_call.1} parent=1 // loop_body
      %s22 = ssub.s32 %s17, 1
      %s23 = ssub.s32 %s17, 2
      %s33 = sadd.s32 1, %s26
      %p34 = scmp.ge.s32.totalorder %s33, 1
      %s35 = scalar_select %p34, 0, %s33
      %s36 = sadd.s32 1, %s25
      %s37 = scalar_select %p34, %s36, %s25
      %p38 = scmp.ge.s32.totalorder %s37, 1
      %s39 = scalar_select %p38, 0, %s37
      %s40 = sadd.s32 1, %s24
      %s41 = scalar_select %p38, %s40, %s24
      %p42 = scmp.ge.s32.totalorder %s41, 2
      %s43 = scalar_select %p42, 0, %s41
      %s44 = ssub.s32 %s24, %s43
      %s45 = ssub.s32 %s26, %s35
      %s46 = sor.u32 %s44, %s45
      %p47 = scmp.eq.s32.totalorder %s46, 0
      %s49 = sadd.s32 %s48, 1
      %s50 = scalar_select %p47, %s48, %s49
      %p53 = pneg %p47
      %p54 = scmp.eq.s32.totalorder %s17, 1
      %p55 = por %p53, %p54
      %p56 = scmp.ne.s32.totalorder %s48, %s51
      %p57 = scmp.eq.s32.totalorder %s17, 0
      %p58 = por %p56, %p57
      %p59 = scmp.ne.s32.totalorder %s48, %s51
      %p60 = scmp.eq.s32.totalorder %s22, 1
      %p61 = por %p59, %p60
      %p62 = scmp.ne.s32.totalorder %s51, %s52
      %p63 = scmp.eq.s32.totalorder %s22, 0
      %p64 = por %p62, %p63
      %p65 = scmp.ne.s32.totalorder %s51, %s52
      %p66 = scmp.eq.s32.totalorder %s23, 1
      %p67 = por %p65, %p66
      %p69 = scmp.ne.s32.totalorder %s52, %s68
      %p70 = scmp.eq.s32.totalorder %s23, 0
      %p71 = por %p69, %p70
      %s72 = ssub.s32 %s25, %s39
      %s73 = ssub.s32 %s26, %s35
      %s74 = sor.u32 %s72, %s73
      %p75 = scmp.eq.s32.totalorder %s74, 0
      %s77 = sadd.s32 %s76, 1
      %s78 = scalar_select %p75, %s76, %s77
      %p81 = pneg %p75
      %p82 = scmp.eq.s32.totalorder %s17, 1
      %p83 = por %p81, %p82
      %p84 = scmp.ne.s32.totalorder %s76, %s79
      %p85 = scmp.eq.s32.totalorder %s17, 0
      %p86 = por %p84, %p85
      %p87 = scmp.ne.s32.totalorder %s76, %s79
      %p88 = scmp.eq.s32.totalorder %s22, 1
      %p89 = por %p87, %p88
      %p90 = scmp.ne.s32.totalorder %s79, %s80
      %p91 = scmp.eq.s32.totalorder %s22, 0
      %p92 = por %p90, %p91
      %p93 = scmp.ne.s32.totalorder %s79, %s80
      %p94 = scmp.eq.s32.totalorder %s23, 1
      %p95 = por %p93, %p94
      %p97 = scmp.ne.s32.totalorder %s80, %s96
      %p98 = scmp.eq.s32.totalorder %s23, 0
      %p99 = por %p97, %p98
      %s101 = sadd.s32 %s100, 1
      %p104 = scmp.eq.s32.totalorder %s17, 1
      %p105 = scmp.ne.s32.totalorder %s100, %s102
      %p106 = scmp.eq.s32.totalorder %s17, 0
      %p107 = por %p105, %p106
      %p108 = scmp.ne.s32.totalorder %s100, %s102
      %p109 = scmp.eq.s32.totalorder %s22, 1
      %p110 = por %p108, %p109
      %p111 = scmp.ne.s32.totalorder %s102, %s103
      %p112 = scmp.eq.s32.totalorder %s22, 0
      %p113 = por %p111, %p112
      %p114 = scmp.ne.s32.totalorder %s102, %s103
      %p115 = scmp.eq.s32.totalorder %s23, 1
      %p116 = por %p114, %p115
      %p118 = scmp.ne.s32.totalorder %s103, %s117
      %p119 = scmp.eq.s32.totalorder %s23, 0
      %p120 = por %p118, %p119
      %s122 = sadd.s32 %s121, 1
      %p125 = scmp.eq.s32.totalorder %s17, 1
      %p126 = scmp.ne.s32.totalorder %s121, %s123
      %p127 = scmp.eq.s32.totalorder %s17, 0
      %p128 = por %p126, %p127
      %p129 = scmp.ne.s32.totalorder %s121, %s123
      %p130 = scmp.eq.s32.totalorder %s22, 1
      %p131 = por %p129, %p130
      %p132 = scmp.ne.s32.totalorder %s123, %s124
      %p133 = scmp.eq.s32.totalorder %s22, 0
      %p134 = por %p132, %p133
      %p135 = scmp.ne.s32.totalorder %s123, %s124
      %p136 = scmp.eq.s32.totalorder %s23, 1
      %p137 = por %p135, %p136
      %p139 = scmp.ne.s32.totalorder %s124, %s138
      %p140 = scmp.eq.s32.totalorder %s23, 0
      %p141 = por %p139, %p140
      %s142 = ssub.s32 %s24, %s43
      %s143 = ssub.s32 %s25, %s39
      %s144 = sor.u32 %s142, %s143
      %p145 = scmp.eq.s32.totalorder %s144, 0
      %s147 = sadd.s32 %s146, 1
      %s148 = scalar_select %p145, %s146, %s147
      %p151 = pneg %p145
      %p152 = scmp.eq.s32.totalorder %s17, 1
      %p153 = por %p151, %p152
      %p154 = scmp.ne.s32.totalorder %s146, %s149
      %p155 = scmp.eq.s32.totalorder %s17, 0
      %p156 = por %p154, %p155
      %p157 = scmp.ne.s32.totalorder %s146, %s149
      %p158 = scmp.eq.s32.totalorder %s22, 1
      %p159 = por %p157, %p158
      %p160 = scmp.ne.s32.totalorder %s149, %s150
      %p161 = scmp.eq.s32.totalorder %s22, 0
      %p162 = por %p160, %p161
      %p163 = scmp.ne.s32.totalorder %s149, %s150
      %p164 = scmp.eq.s32.totalorder %s23, 1
      %p165 = por %p163, %p164
      %p167 = scmp.ne.s32.totalorder %s150, %s166
      %p168 = scmp.eq.s32.totalorder %s23, 0
      %p169 = por %p167, %p168
      %p170 = scmp.le.s32.totalorder 1, %s17
      %p171 = scmp.lt.s32.totalorder %s17, 3
      %p172 = pnand %p170, %p171
      %p173 = pneg %p172
      // Predicated region
      $region9: #{tpu_custom_call.1} parent=5 // pred_check
        _
      $region10: #{tpu_custom_call.1} parent=5 // pred_check_branch
        %175 = sbr.rel (%p172) target = $region12
      $region11: #{tpu_custom_call.1} parent=5 // pred_region
        %s176 = ssub.s32 %s17, 1
        // Predicated region
        $region13: #{tpu_custom_call.1} parent=11 // pred_check
          %p177 = pneg %p92
        $region14: #{tpu_custom_call.1} parent=11 // pred_check_branch
          %179 = sbr.rel (%p177) target = $region16
        $region15: #{tpu_custom_call.1} parent=11 // pred_region
          %s180 = smul.u32 32, %s28
          %s181 = smul.u32 3, %s29
          %183 = vsyncadd [#allocation6], 0
          %s184 = smul.addr %s180, 3
          %s185 = sadd.s32 %s181, %s184
          %s186 = smul.addr %s185, 4
          %s187 = scalar_lea.hbm %s1, %s186
          %s188 = sshll.u32 %s187, 4
          %s189 = int_to_ptr.hbm [resolvable:$true] %s188
          %s190 = sshll.u32 [#allocation5], 4
          %s191 = int_to_ptr.vmem [resolvable:$true] %s190
          %196 = dma.hbm_to_vmem [thread:$0]  %s189, 6144, %s191, [#allocation6], 192, 192, 12
        $region16: #{tpu_custom_call.1} parent=11 // pred_fallthru
          _
        // Predicated region
        $region17: #{tpu_custom_call.1} parent=11 // pred_check
          %p197 = pneg %p113
        $region18: #{tpu_custom_call.1} parent=11 // pred_check_branch
          %199 = sbr.rel (%p197) target = $region20
        $region19: #{tpu_custom_call.1} parent=11 // pred_region
          %201 = vsyncadd [#allocation6], 0
          %s203 = sshll.u32 %s2, 4
          %s204 = int_to_ptr.hbm [resolvable:$true] %s203
          %s205 = sshll.u32 [#allocation7], 4
          %s206 = int_to_ptr.vmem [resolvable:$true] %s205
          %208 = dma.hbm_to_vmem [thread:$0]  %s204, 32, %s206, [#allocation6]
        $region20: #{tpu_custom_call.1} parent=11 // pred_fallthru
          _
        // Predicated region
        $region21: #{tpu_custom_call.1} parent=11 // pred_check
          %p209 = pneg %p134
        $region22: #{tpu_custom_call.1} parent=11 // pred_check_branch
          %211 = sbr.rel (%p209) target = $region24
        $region23: #{tpu_custom_call.1} parent=11 // pred_region
          _
        $region24: #{tpu_custom_call.1} parent=11 // pred_fallthru
          _
      $region12: #{tpu_custom_call.1} parent=5 // pred_fallthru
        _
      %p212 = scmp.lt.s32.totalorder %s17, 2
      // Predicated region
      $region25: #{tpu_custom_call.1} parent=5 // pred_check
        %p213 = pneg %p212
      $region26: #{tpu_custom_call.1} parent=5 // pred_check_branch
        %215 = sbr.rel (%p213) target = $region28
      $region27: #{tpu_custom_call.1} parent=5 // pred_region
        // Predicated region
        $region29: #{tpu_custom_call.1} parent=27 // pred_check
          %p216 = pneg %p58
        $region30: #{tpu_custom_call.1} parent=27 // pred_check_branch
          %218 = sbr.rel (%p216) target = $region32
        $region31: #{tpu_custom_call.1} parent=27 // pred_region
          %s219 = sand.u32 %s48, 1
          %s220 = scalar_lea.sflag [#allocation3], %s219
          %s221 = sand.u32 %s48, 1
          %s222 = smul.addr %s221, 240
          %s223 = scalar_lea.vmem [#allocation2], %s222
          %s224 = smul.u32 20, %s24
          %s225 = smul.u32 3, %s26
          %227 = vsyncadd %s220, 0
          %s228 = smul.addr %s224, 3
          %s229 = sadd.s32 %s225, %s228
          %s230 = smul.addr %s229, 4
          %s231 = scalar_lea.hbm %s0, %s230
          %s232 = sshll.u32 %s231, 4
          %s233 = int_to_ptr.hbm [resolvable:$true] %s232
          %s234 = sshll.u32 %s223, 4
          %s235 = int_to_ptr.vmem [resolvable:$true] %s234
          %240 = dma.hbm_to_vmem [thread:$0]  %s233, 3840, %s235, %s220, 192, 192, 12
        $region32: #{tpu_custom_call.1} parent=27 // pred_fallthru
          _
      $region28: #{tpu_custom_call.1} parent=5 // pred_fallthru
        _
      %p241 = scmp.le.s32.totalorder 1, %s17
      %p242 = scmp.lt.s32.totalorder %s17, 3
      %p243 = pnand %p241, %p242
      %p244 = pneg %p243
      // Predicated region
      $region33: #{tpu_custom_call.1} parent=5 // pred_check
        _
      $region34: #{tpu_custom_call.1} parent=5 // pred_check_branch
        %246 = sbr.rel (%p243) target = $region36
      $region35: #{tpu_custom_call.1} parent=5 // pred_region
        %s247 = ssub.s32 %s17, 1
        %s248 = sand.u32 %s51, 1
        %s249 = scalar_lea.sflag [#allocation3], %s248
        %s250 = sand.u32 %s51, 1
        %s251 = smul.addr %s250, 240
        %s252 = scalar_lea.vmem [#allocation2], %s251
        // Predicated region
        $region37: #{tpu_custom_call.1} parent=35 // pred_check
          %p253 = pneg %p64
        $region38: #{tpu_custom_call.1} parent=35 // pred_check_branch
          %255 = sbr.rel (%p253) target = $region40
        $region39: #{tpu_custom_call.1} parent=35 // pred_region
          %257 = dma.done %s249, 3840
        $region40: #{tpu_custom_call.1} parent=35 // pred_fallthru
          _
        // Predicated region
        $region41: #{tpu_custom_call.1} parent=35 // pred_check
          %p258 = pneg %p92
        $region42: #{tpu_custom_call.1} parent=35 // pred_check_branch
          %260 = sbr.rel (%p258) target = $region44
        $region43: #{tpu_custom_call.1} parent=35 // pred_region
          %262 = dma.done [#allocation6], 6144
        $region44: #{tpu_custom_call.1} parent=35 // pred_fallthru
          _
        // Predicated region
        $region45: #{tpu_custom_call.1} parent=35 // pred_check
          %p263 = pneg %p113
        $region46: #{tpu_custom_call.1} parent=35 // pred_check_branch
          %265 = sbr.rel (%p263) target = $region48
        $region47: #{tpu_custom_call.1} parent=35 // pred_region
          %267 = dma.done [#allocation6], 32
        $region48: #{tpu_custom_call.1} parent=35 // pred_fallthru
          _
        %s268 = sand.u32 %s51, 1
        %s269 = scalar_lea.sflag [#allocation3], %s268
        %s270 = sand.u32 %s51, 1
        %s271 = smul.addr %s270, 240
        %s272 = scalar_lea.vmem [#allocation2], %s271
        %p273 = pneg %p64
        %p274 = pneg %p61
        %p275 = pneg %p92
        %p276 = pneg %p89
        %p277 = pneg %p113
        %p278 = pneg %p110
        %p279 = pneg %p134
        %p280 = pneg %p131
        %p281 = pneg %p162
        %p282 = pneg %p159
        %s283 = sand.u32 %s149, 1
        %s284 = scalar_lea.sflag [#allocation4], %s283
        %s285 = sand.u32 %s149, 1
        %s286 = smul.addr %s285, 320
        %s287 = scalar_lea.vmem [#allocation8], %s286
        %s288 = smul.u32 20, %s27
        %s289 = smul.u32 3, %s29
        %s290 = smul.u32 32, %s28
        %s291 = smul.u32 3, %s29
        %s292 = smul.u32 20, %s27
        %s293 = smul.u32 2, %s28
        %v294 = vld [vmem:[%s252] sm:$0xff]
        %v295 = vld [vmem:[%s252 + $0x8] sm:$0xf]
        %v296 = vld [vmem:[%s252 + $0xc] sm:$0xff]
        %v297 = vld [vmem:[%s252 + $0x14] sm:$0xf]
        %v298 = vld [vmem:[%s252 + $0x18] sm:$0xff]
        %v299 = vld [vmem:[%s252 + $0x20] sm:$0xf]
        %v300 = vld [vmem:[%s252 + $0x24] sm:$0xff]
        %v301 = vld [vmem:[%s252 + $0x2c] sm:$0xf]
        %v302 = vld [vmem:[%s252 + $0x30] sm:$0xff]
        %v303 = vld [vmem:[%s252 + $0x38] sm:$0xf]
        %v304 = vld [vmem:[%s252 + $0x3c] sm:$0xff]
        %v305 = vld [vmem:[%s252 + $0x44] sm:$0xf]
        %v306 = vld [vmem:[%s252 + $0x48] sm:$0xff]
        %v307 = vld [vmem:[%s252 + $0x50] sm:$0xf]
        %v308 = vld [vmem:[%s252 + $0x54] sm:$0xff]
        %v309 = vld [vmem:[%s252 + $0x5c] sm:$0xf]
        %v310 = vld [vmem:[%s252 + $0x60] sm:$0xff]
        %v311 = vld [vmem:[%s252 + $0x68] sm:$0xf]
        %v312 = vld [vmem:[%s252 + $0x6c] sm:$0xff]
        %v313 = vld [vmem:[%s252 + $0x74] sm:$0xf]
        %v314 = vld [vmem:[%s252 + $0x78] sm:$0xff]
        %v315 = vld [vmem:[%s252 + $0x80] sm:$0xf]
        %v316 = vld [vmem:[%s252 + $0x84] sm:$0xff]
        %v317 = vld [vmem:[%s252 + $0x8c] sm:$0xf]
        %v318 = vld [vmem:[%s252 + $0x90] sm:$0xff]
        %v319 = vld [vmem:[%s252 + $0x98] sm:$0xf]
        %v320 = vld [vmem:[%s252 + $0x9c] sm:$0xff]
        %v321 = vld [vmem:[%s252 + $0xa4] sm:$0xf]
        %v322 = vld [vmem:[%s252 + $0xa8] sm:$0xff]
        %v323 = vld [vmem:[%s252 + $0xb0] sm:$0xf]
        %v324 = vld [vmem:[%s252 + $0xb4] sm:$0xff]
        %v325 = vld [vmem:[%s252 + $0xbc] sm:$0xf]
        %v326 = vld [vmem:[%s252 + $0xc0] sm:$0xff]
        %v327 = vld [vmem:[%s252 + $0xc8] sm:$0xf]
        %v328 = vld [vmem:[%s252 + $0xcc] sm:$0xff]
        %v329 = vld [vmem:[%s252 + $0xd4] sm:$0xf]
        %v330 = vld [vmem:[%s252 + $0xd8] sm:$0xff]
        %v331 = vld [vmem:[%s252 + $0xe0] sm:$0xf]
        %v332 = vld [vmem:[%s252 + $0xe4] sm:$0xff]
        %v333 = vld [vmem:[%s252 + $0xec] sm:$0xf]
        %v334 = vld [vmem:[#allocation5] sm:$0xff]
        %v335 = vld [vmem:[#allocation5 + $0x8] sm:$0xf]
        %v336 = vld [vmem:[#allocation5 + $0xc] sm:$0xff]
        %v337 = vld [vmem:[#allocation5 + $0x14] sm:$0xf]
        %v338 = vld [vmem:[#allocation5 + $0x18] sm:$0xff]
        %v339 = vld [vmem:[#allocation5 + $0x20] sm:$0xf]
        %v340 = vld [vmem:[#allocation5 + $0x24] sm:$0xff]
        %v341 = vld [vmem:[#allocation5 + $0x2c] sm:$0xf]
        %v342 = vld [vmem:[#allocation5 + $0x30] sm:$0xff]
        %v343 = vld [vmem:[#allocation5 + $0x38] sm:$0xf]
        %v344 = vld [vmem:[#allocation5 + $0x3c] sm:$0xff]
        %v345 = vld [vmem:[#allocation5 + $0x44] sm:$0xf]
        %v346 = vld [vmem:[#allocation5 + $0x48] sm:$0xff]
        %v347 = vld [vmem:[#allocation5 + $0x50] sm:$0xf]
        %v348 = vld [vmem:[#allocation5 + $0x54] sm:$0xff]
        %v349 = vld [vmem:[#allocation5 + $0x5c] sm:$0xf]
        %v350 = vld [vmem:[#allocation5 + $0x60] sm:$0xff]
        %v351 = vld [vmem:[#allocation5 + $0x68] sm:$0xf]
        %v352 = vld [vmem:[#allocation5 + $0x6c] sm:$0xff]
        %v353 = vld [vmem:[#allocation5 + $0x74] sm:$0xf]
        %v354 = vld [vmem:[#allocation5 + $0x78] sm:$0xff]
        %v355 = vld [vmem:[#allocation5 + $0x80] sm:$0xf]
        %v356 = vld [vmem:[#allocation5 + $0x84] sm:$0xff]
        %v357 = vld [vmem:[#allocation5 + $0x8c] sm:$0xf]
        %v358 = vld [vmem:[#allocation5 + $0x90] sm:$0xff]
        %v359 = vld [vmem:[#allocation5 + $0x98] sm:$0xf]
        %v360 = vld [vmem:[#allocation5 + $0x9c] sm:$0xff]
        %v361 = vld [vmem:[#allocation5 + $0xa4] sm:$0xf]
        %v362 = vld [vmem:[#allocation5 + $0xa8] sm:$0xff]
        %v363 = vld [vmem:[#allocation5 + $0xb0] sm:$0xf]
        %v364 = vld [vmem:[#allocation5 + $0xb4] sm:$0xff]
        %v365 = vld [vmem:[#allocation5 + $0xbc] sm:$0xf]
        %v366 = vld [vmem:[#allocation5 + $0xc0] sm:$0xff]
        %v367 = vld [vmem:[#allocation5 + $0xc8] sm:$0xf]
        %v368 = vld [vmem:[#allocation5 + $0xcc] sm:$0xff]
        %v369 = vld [vmem:[#allocation5 + $0xd4] sm:$0xf]
        %v370 = vld [vmem:[#allocation5 + $0xd8] sm:$0xff]
        %v371 = vld [vmem:[#allocation5 + $0xe0] sm:$0xf]
        %v372 = vld [vmem:[#allocation5 + $0xe4] sm:$0xff]
        %v373 = vld [vmem:[#allocation5 + $0xec] sm:$0xf]
        %v374 = vld [vmem:[#allocation5 + $0xf0] sm:$0xff]
        %v375 = vld [vmem:[#allocation5 + $0xf8] sm:$0xf]
        %v376 = vld [vmem:[#allocation5 + $0xfc] sm:$0xff]
        %v377 = vld [vmem:[#allocation5 + $0x104] sm:$0xf]
        %v378 = vld [vmem:[#allocation5 + $0x108] sm:$0xff]
        %v379 = vld [vmem:[#allocation5 + $0x110] sm:$0xf]
        %v380 = vld [vmem:[#allocation5 + $0x114] sm:$0xff]
        %v381 = vld [vmem:[#allocation5 + $0x11c] sm:$0xf]
        %v382 = vld [vmem:[#allocation5 + $0x120] sm:$0xff]
        %v383 = vld [vmem:[#allocation5 + $0x128] sm:$0xf]
        %v384 = vld [vmem:[#allocation5 + $0x12c] sm:$0xff]
        %v385 = vld [vmem:[#allocation5 + $0x134] sm:$0xf]
        %v386 = vld [vmem:[#allocation5 + $0x138] sm:$0xff]
        %v387 = vld [vmem:[#allocation5 + $0x140] sm:$0xf]
        %v388 = vld [vmem:[#allocation5 + $0x144] sm:$0xff]
        %v389 = vld [vmem:[#allocation5 + $0x14c] sm:$0xf]
        %v390 = vld [vmem:[#allocation5 + $0x150] sm:$0xff]
        %v391 = vld [vmem:[#allocation5 + $0x158] sm:$0xf]
        %v392 = vld [vmem:[#allocation5 + $0x15c] sm:$0xff]
        %v393 = vld [vmem:[#allocation5 + $0x164] sm:$0xf]
        %v394 = vld [vmem:[#allocation5 + $0x168] sm:$0xff]
        %v395 = vld [vmem:[#allocation5 + $0x170] sm:$0xf]
        %v396 = vld [vmem:[#allocation5 + $0x174] sm:$0xff]
        %v397 = vld [vmem:[#allocation5 + $0x17c] sm:$0xf]
        %v398 = vld [vmem:[#allocation7] sm:$0x3]
        %v400 = vperm.slane %v398, 0
        %v401 = vperm.slane %v398, 1
        %v444 = vunpack.c.l.b16 %v294
        %v445 = vunpack.c.h.b16 %v294
        %v446 = vunpack.c.l.b16 %v295
        %v447 = vunpack.c.l.b16 %v296
        %v448 = vunpack.c.h.b16 %v296
        %v449 = vunpack.c.l.b16 %v297
        %v450 = vunpack.c.l.b16 %v298
        %v451 = vunpack.c.h.b16 %v298
        %v452 = vunpack.c.l.b16 %v299
        %v453 = vunpack.c.l.b16 %v300
        %v454 = vunpack.c.h.b16 %v300
        %v455 = vunpack.c.l.b16 %v301
        %v456 = vunpack.c.l.b16 %v302
        %v457 = vunpack.c.h.b16 %v302
        %v458 = vunpack.c.l.b16 %v303
        %v459 = vunpack.c.l.b16 %v304
        %v460 = vunpack.c.h.b16 %v304
        %v461 = vunpack.c.l.b16 %v305
        %v462 = vunpack.c.l.b16 %v306
        %v463 = vunpack.c.h.b16 %v306
        %v464 = vunpack.c.l.b16 %v307
        %v465 = vunpack.c.l.b16 %v308
        %v466 = vunpack.c.h.b16 %v308
        %v467 = vunpack.c.l.b16 %v309
        %v468 = vunpack.c.l.b16 %v310
        %v469 = vunpack.c.h.b16 %v310
        %v470 = vunpack.c.l.b16 %v311
        %v471 = vunpack.c.l.b16 %v312
        %v472 = vunpack.c.h.b16 %v312
        %v473 = vunpack.c.l.b16 %v313
        %v474 = vunpack.c.l.b16 %v314
        %v475 = vunpack.c.h.b16 %v314
        %v476 = vunpack.c.l.b16 %v315
        %v477 = vunpack.c.l.b16 %v316
        %v478 = vunpack.c.h.b16 %v316
        %v479 = vunpack.c.l.b16 %v317
        %v480 = vunpack.c.l.b16 %v318
        %v481 = vunpack.c.h.b16 %v318
        %v482 = vunpack.c.l.b16 %v319
        %v483 = vunpack.c.l.b16 %v320
        %v484 = vunpack.c.h.b16 %v320
        %v485 = vunpack.c.l.b16 %v321
        %v486 = vunpack.c.l.b16 %v322
        %v487 = vunpack.c.h.b16 %v322
        %v488 = vunpack.c.l.b16 %v323
        %v489 = vunpack.c.l.b16 %v324
        %v490 = vunpack.c.h.b16 %v324
        %v491 = vunpack.c.l.b16 %v325
        %v492 = vunpack.c.l.b16 %v326
        %v493 = vunpack.c.h.b16 %v326
        %v494 = vunpack.c.l.b16 %v327
        %v495 = vunpack.c.l.b16 %v328
        %v496 = vunpack.c.h.b16 %v328
        %v497 = vunpack.c.l.b16 %v329
        %v498 = vunpack.c.l.b16 %v330
        %v499 = vunpack.c.h.b16 %v330
        %v500 = vunpack.c.l.b16 %v331
        %v501 = vunpack.c.l.b16 %v332
        %v502 = vunpack.c.h.b16 %v332
        %v503 = vunpack.c.l.b16 %v333
        %v504 = vpack.c.b16 %v447, %v444
        %v505 = vpack.c.b16 %v448, %v445
        %v506 = vpack.c.b16 %v449, %v446
        %v507 = vpack.c.b16 %v453, %v450
        %v508 = vpack.c.b16 %v454, %v451
        %v509 = vpack.c.b16 %v455, %v452
        %v510 = vpack.c.b16 %v459, %v456
        %v511 = vpack.c.b16 %v460, %v457
        %v512 = vpack.c.b16 %v461, %v458
        %v513 = vpack.c.b16 %v465, %v462
        %v514 = vpack.c.b16 %v466, %v463
        %v515 = vpack.c.b16 %v467, %v464
        %v516 = vpack.c.b16 %v471, %v468
        %v517 = vpack.c.b16 %v472, %v469
        %v518 = vpack.c.b16 %v473, %v470
        %v519 = vpack.c.b16 %v477, %v474
        %v520 = vpack.c.b16 %v478, %v475
        %v521 = vpack.c.b16 %v479, %v476
        %v522 = vpack.c.b16 %v483, %v480
        %v523 = vpack.c.b16 %v484, %v481
        %v524 = vpack.c.b16 %v485, %v482
        %v525 = vpack.c.b16 %v489, %v486
        %v526 = vpack.c.b16 %v490, %v487
        %v527 = vpack.c.b16 %v491, %v488
        %v528 = vpack.c.b16 %v495, %v492
        %v529 = vpack.c.b16 %v496, %v493
        %v530 = vpack.c.b16 %v497, %v494
        %v531 = vpack.c.b16 %v501, %v498
        %v532 = vpack.c.b16 %v502, %v499
        %v533 = vpack.c.b16 %v503, %v500
        %v628 = vunpack.c.l.b16 %v334
        %v629 = vunpack.c.h.b16 %v334
        %v630 = vunpack.c.l.b16 %v335
        %v631 = vunpack.c.l.b16 %v336
        %v632 = vunpack.c.h.b16 %v336
        %v633 = vunpack.c.l.b16 %v337
        %v634 = vunpack.c.l.b16 %v338
        %v635 = vunpack.c.h.b16 %v338
        %v636 = vunpack.c.l.b16 %v339
        %v637 = vunpack.c.l.b16 %v340
        %v638 = vunpack.c.h.b16 %v340
        %v639 = vunpack.c.l.b16 %v341
        %v640 = vunpack.c.l.b16 %v342
        %v641 = vunpack.c.h.b16 %v342
        %v642 = vunpack.c.l.b16 %v343
        %v643 = vunpack.c.l.b16 %v344
        %v644 = vunpack.c.h.b16 %v344
        %v645 = vunpack.c.l.b16 %v345
        %v646 = vunpack.c.l.b16 %v346
        %v647 = vunpack.c.h.b16 %v346
        %v648 = vunpack.c.l.b16 %v347
        %v649 = vunpack.c.l.b16 %v348
        %v650 = vunpack.c.h.b16 %v348
        %v651 = vunpack.c.l.b16 %v349
        %v652 = vunpack.c.l.b16 %v350
        %v653 = vunpack.c.h.b16 %v350
        %v654 = vunpack.c.l.b16 %v351
        %v655 = vunpack.c.l.b16 %v352
        %v656 = vunpack.c.h.b16 %v352
        %v657 = vunpack.c.l.b16 %v353
        %v658 = vunpack.c.l.b16 %v354
        %v659 = vunpack.c.h.b16 %v354
        %v660 = vunpack.c.l.b16 %v355
        %v661 = vunpack.c.l.b16 %v356
        %v662 = vunpack.c.h.b16 %v356
        %v663 = vunpack.c.l.b16 %v357
        %v664 = vunpack.c.l.b16 %v358
        %v665 = vunpack.c.h.b16 %v358
        %v666 = vunpack.c.l.b16 %v359
        %v667 = vunpack.c.l.b16 %v360
        %v668 = vunpack.c.h.b16 %v360
        %v669 = vunpack.c.l.b16 %v361
        %v670 = vunpack.c.l.b16 %v362
        %v671 = vunpack.c.h.b16 %v362
        %v672 = vunpack.c.l.b16 %v363
        %v673 = vunpack.c.l.b16 %v364
        %v674 = vunpack.c.h.b16 %v364
        %v675 = vunpack.c.l.b16 %v365
        %v676 = vunpack.c.l.b16 %v366
        %v677 = vunpack.c.h.b16 %v366
        %v678 = vunpack.c.l.b16 %v367
        %v679 = vunpack.c.l.b16 %v368
        %v680 = vunpack.c.h.b16 %v368
        %v681 = vunpack.c.l.b16 %v369
        %v682 = vunpack.c.l.b16 %v370
        %v683 = vunpack.c.h.b16 %v370
        %v684 = vunpack.c.l.b16 %v371
        %v685 = vunpack.c.l.b16 %v372
        %v686 = vunpack.c.h.b16 %v372
        %v687 = vunpack.c.l.b16 %v373
        %v688 = vunpack.c.l.b16 %v374
        %v689 = vunpack.c.h.b16 %v374
        %v690 = vunpack.c.l.b16 %v375
        %v691 = vunpack.c.l.b16 %v376
        %v692 = vunpack.c.h.b16 %v376
        %v693 = vunpack.c.l.b16 %v377
        %v694 = vunpack.c.l.b16 %v378
        %v695 = vunpack.c.h.b16 %v378
        %v696 = vunpack.c.l.b16 %v379
        %v697 = vunpack.c.l.b16 %v380
        %v698 = vunpack.c.h.b16 %v380
        %v699 = vunpack.c.l.b16 %v381
        %v700 = vunpack.c.l.b16 %v382
        %v701 = vunpack.c.h.b16 %v382
        %v702 = vunpack.c.l.b16 %v383
        %v703 = vunpack.c.l.b16 %v384
        %v704 = vunpack.c.h.b16 %v384
        %v705 = vunpack.c.l.b16 %v385
        %v706 = vunpack.c.l.b16 %v386
        %v707 = vunpack.c.h.b16 %v386
        %v708 = vunpack.c.l.b16 %v387
        %v709 = vunpack.c.l.b16 %v388
        %v710 = vunpack.c.h.b16 %v388
        %v711 = vunpack.c.l.b16 %v389
        %v712 = vunpack.c.l.b16 %v390
        %v713 = vunpack.c.h.b16 %v390
        %v714 = vunpack.c.l.b16 %v391
        %v715 = vunpack.c.l.b16 %v392
        %v716 = vunpack.c.h.b16 %v392
        %v717 = vunpack.c.l.b16 %v393
        %v718 = vunpack.c.l.b16 %v394
        %v719 = vunpack.c.h.b16 %v394
        %v720 = vunpack.c.l.b16 %v395
        %v721 = vunpack.c.l.b16 %v396
        %v722 = vunpack.c.h.b16 %v396
        %v723 = vunpack.c.l.b16 %v397
        %v724 = vpack.c.b16 %v631, %v628
        %v725 = vpack.c.b16 %v632, %v629
        %v726 = vpack.c.b16 %v633, %v630
        %v727 = vpack.c.b16 %v637, %v634
        %v728 = vpack.c.b16 %v638, %v635
        %v729 = vpack.c.b16 %v639, %v636
        %v730 = vpack.c.b16 %v643, %v640
        %v731 = vpack.c.b16 %v644, %v641
        %v732 = vpack.c.b16 %v645, %v642
        %v733 = vpack.c.b16 %v649, %v646
        %v734 = vpack.c.b16 %v650, %v647
        %v735 = vpack.c.b16 %v651, %v648
        %v736 = vpack.c.b16 %v655, %v652
        %v737 = vpack.c.b16 %v656, %v653
        %v738 = vpack.c.b16 %v657, %v654
        %v739 = vpack.c.b16 %v661, %v658
        %v740 = vpack.c.b16 %v662, %v659
        %v741 = vpack.c.b16 %v663, %v660
        %v742 = vpack.c.b16 %v667, %v664
        %v743 = vpack.c.b16 %v668, %v665
        %v744 = vpack.c.b16 %v669, %v666
        %v745 = vpack.c.b16 %v673, %v670
        %v746 = vpack.c.b16 %v674, %v671
        %v747 = vpack.c.b16 %v675, %v672
        %v748 = vpack.c.b16 %v679, %v676
        %v749 = vpack.c.b16 %v680, %v677
        %v750 = vpack.c.b16 %v681, %v678
        %v751 = vpack.c.b16 %v685, %v682
        %v752 = vpack.c.b16 %v686, %v683
        %v753 = vpack.c.b16 %v687, %v684
        %v754 = vpack.c.b16 %v691, %v688
        %v755 = vpack.c.b16 %v692, %v689
        %v756 = vpack.c.b16 %v693, %v690
        %v757 = vpack.c.b16 %v697, %v694
        %v758 = vpack.c.b16 %v698, %v695
        %v759 = vpack.c.b16 %v699, %v696
        %v760 = vpack.c.b16 %v703, %v700
        %v761 = vpack.c.b16 %v704, %v701
        %v762 = vpack.c.b16 %v705, %v702
        %v763 = vpack.c.b16 %v709, %v706
        %v764 = vpack.c.b16 %v710, %v707
        %v765 = vpack.c.b16 %v711, %v708
        %v766 = vpack.c.b16 %v715, %v712
        %v767 = vpack.c.b16 %v716, %v713
        %v768 = vpack.c.b16 %v717, %v714
        %v769 = vpack.c.b16 %v721, %v718
        %v770 = vpack.c.b16 %v722, %v719
        %v771 = vpack.c.b16 %v723, %v720
        %820 = vmatpush.bf16.xpose.msra.mxu0 %v745
        %821 = vmatpush.bf16.xpose.msra.mxu0 %v742
        %822 = vmatpush.bf16.xpose.msra.mxu0 %v739
        %823 = vmatpush.bf16.xpose.msra.mxu0 %v736
        %824 = vmatpush.bf16.xpose.msra.mxu0 %v733
        %825 = vmatpush.bf16.xpose.msra.mxu0 %v730
        %826 = vmatpush.bf16.xpose.msra.mxu0 %v727
        %827 = vmatpush.bf16.xpose.msra.mxu0 %v724
        %828 = vmatmul.bf16.gmra.mxu0 %v504
        %v829 = vpop.f32.mrf.mxu0
        %v830 = vadd.f32 %v400, %v829
        %v831 = vpop.f32.mrf.mxu0
        %v832 = vadd.f32 %v400, %v831
        %833 = vmatmul.bf16.gmra.mxu0 %v507
        %v834 = vpop.f32.mrf.mxu0
        %v835 = vadd.f32 %v400, %v834
        %v836 = vpop.f32.mrf.mxu0
        %v837 = vadd.f32 %v400, %v836
        %838 = vmatmul.bf16.gmra.mxu0 %v510
        %v839 = vpop.f32.mrf.mxu0
        %v840 = vadd.f32 %v400, %v839
        %v841 = vpop.f32.mrf.mxu0
        %v842 = vadd.f32 %v400, %v841
        %843 = vmatmul.bf16.gmra.mxu0 %v513
        %v844 = vpop.f32.mrf.mxu0
        %v845 = vadd.f32 %v400, %v844
        %v846 = vpop.f32.mrf.mxu0
        %v847 = vadd.f32 %v400, %v846
        %848 = vmatmul.bf16.gmra.mxu0 %v516
        %v849 = vpop.f32.mrf.mxu0
        %v850 = vadd.f32 %v400, %v849
        %v851 = vpop.f32.mrf.mxu0
        %v852 = vadd.f32 %v400, %v851
        %853 = vmatmul.bf16.gmra.mxu0 %v519
        %v854 = vpop.f32.mrf.mxu0
        %v855 = vadd.f32 %v400, %v854
        %v856 = vpop.f32.mrf.mxu0
        %v857 = vadd.f32 %v400, %v856
        %858 = vmatmul.bf16.gmra.mxu0 %v522
        %v859 = vpop.f32.mrf.mxu0
        %v860 = vadd.f32 %v400, %v859
        %v861 = vpop.f32.mrf.mxu0
        %v862 = vadd.f32 %v400, %v861
        %863 = vmatmul.bf16.gmra.mxu0 %v525
        %v864 = vpop.f32.mrf.mxu0
        %v865 = vadd.f32 %v400, %v864
        %v866 = vpop.f32.mrf.mxu0
        %v867 = vadd.f32 %v400, %v866
        %868 = vmatmul.bf16.gmra.mxu0 %v528
        %v869 = vpop.f32.mrf.mxu0
        %v870 = vadd.f32 %v400, %v869
        %v871 = vpop.f32.mrf.mxu0
        %v872 = vadd.f32 %v400, %v871
        %873 = vmatmul.bf16.gmra.mxu0 %v531
        %v874 = vpop.f32.mrf.mxu0
        %v875 = vadd.f32 %v400, %v874
        %v876 = vpop.f32.mrf.mxu0
        %v877 = vadd.f32 %v400, %v876
        %878 = vdwg.mxu0
        %879 = vmatpush.bf16.xpose.msra.mxu0 %v746
        %880 = vmatpush.bf16.xpose.msra.mxu0 %v743
        %881 = vmatpush.bf16.xpose.msra.mxu0 %v740
        %882 = vmatpush.bf16.xpose.msra.mxu0 %v737
        %883 = vmatpush.bf16.xpose.msra.mxu0 %v734
        %884 = vmatpush.bf16.xpose.msra.mxu0 %v731
        %885 = vmatpush.bf16.xpose.msra.mxu0 %v728
        %886 = vmatpush.bf16.xpose.msra.mxu0 %v725
        %887 = vmatmul.bf16.gmra.mxu0 %v505
        %v888 = vpop.f32.mrf.mxu0
        %v889 = vadd.f32 %v830, %v888
        %v890 = vpop.f32.mrf.mxu0
        %v891 = vadd.f32 %v832, %v890
        %892 = vmatmul.bf16.gmra.mxu0 %v508
        %v893 = vpop.f32.mrf.mxu0
        %v894 = vadd.f32 %v835, %v893
        %v895 = vpop.f32.mrf.mxu0
        %v896 = vadd.f32 %v837, %v895
        %897 = vmatmul.bf16.gmra.mxu0 %v511
        %v898 = vpop.f32.mrf.mxu0
        %v899 = vadd.f32 %v840, %v898
        %v900 = vpop.f32.mrf.mxu0
        %v901 = vadd.f32 %v842, %v900
        %902 = vmatmul.bf16.gmra.mxu0 %v514
        %v903 = vpop.f32.mrf.mxu0
        %v904 = vadd.f32 %v845, %v903
        %v905 = vpop.f32.mrf.mxu0
        %v906 = vadd.f32 %v847, %v905
        %907 = vmatmul.bf16.gmra.mxu0 %v517
        %v908 = vpop.f32.mrf.mxu0
        %v909 = vadd.f32 %v850, %v908
        %v910 = vpop.f32.mrf.mxu0
        %v911 = vadd.f32 %v852, %v910
        %912 = vmatmul.bf16.gmra.mxu0 %v520
        %v913 = vpop.f32.mrf.mxu0
        %v914 = vadd.f32 %v855, %v913
        %v915 = vpop.f32.mrf.mxu0
        %v916 = vadd.f32 %v857, %v915
        %917 = vmatmul.bf16.gmra.mxu0 %v523
        %v918 = vpop.f32.mrf.mxu0
        %v919 = vadd.f32 %v860, %v918
        %v920 = vpop.f32.mrf.mxu0
        %v921 = vadd.f32 %v862, %v920
        %922 = vmatmul.bf16.gmra.mxu0 %v526
        %v923 = vpop.f32.mrf.mxu0
        %v924 = vadd.f32 %v865, %v923
        %v925 = vpop.f32.mrf.mxu0
        %v926 = vadd.f32 %v867, %v925
        %927 = vmatmul.bf16.gmra.mxu0 %v529
        %v928 = vpop.f32.mrf.mxu0
        %v929 = vadd.f32 %v870, %v928
        %v930 = vpop.f32.mrf.mxu0
        %v931 = vadd.f32 %v872, %v930
        %932 = vmatmul.bf16.gmra.mxu0 %v532
        %v933 = vpop.f32.mrf.mxu0
        %v934 = vadd.f32 %v875, %v933
        %v935 = vpop.f32.mrf.mxu0
        %v936 = vadd.f32 %v877, %v935
        %937 = vdwg.mxu0
        %938 = vmatpush.bf16.xpose.msra.mxu0 %v747
        %939 = vmatpush.bf16.xpose.msra.mxu0 %v744
        %940 = vmatpush.bf16.xpose.msra.mxu0 %v741
        %941 = vmatpush.bf16.xpose.msra.mxu0 %v738
        %942 = vmatpush.bf16.xpose.msra.mxu0 %v735
        %943 = vmatpush.bf16.xpose.msra.mxu0 %v732
        %944 = vmatpush.bf16.xpose.msra.mxu0 %v729
        %945 = vmatpush.bf16.xpose.msra.mxu0 %v726
        %946 = vmatmul.bf16.gmra.mxu0 %v506
        %v947 = vpop.f32.mrf.mxu0
        %v948 = vadd.f32 %v889, %v947
        %v949 = vpop.f32.mrf.mxu0
        %v950 = vadd.f32 %v891, %v949
        %951 = vmatmul.bf16.gmra.mxu0 %v509
        %v952 = vpop.f32.mrf.mxu0
        %v953 = vadd.f32 %v894, %v952
        %v954 = vpop.f32.mrf.mxu0
        %v955 = vadd.f32 %v896, %v954
        %956 = vmatmul.bf16.gmra.mxu0 %v512
        %v957 = vpop.f32.mrf.mxu0
        %v958 = vadd.f32 %v899, %v957
        %v959 = vpop.f32.mrf.mxu0
        %v960 = vadd.f32 %v901, %v959
        %961 = vmatmul.bf16.gmra.mxu0 %v515
        %v962 = vpop.f32.mrf.mxu0
        %v963 = vadd.f32 %v904, %v962
        %v964 = vpop.f32.mrf.mxu0
        %v965 = vadd.f32 %v906, %v964
        %966 = vmatmul.bf16.gmra.mxu0 %v518
        %v967 = vpop.f32.mrf.mxu0
        %v968 = vadd.f32 %v909, %v967
        %v969 = vpop.f32.mrf.mxu0
        %v970 = vadd.f32 %v911, %v969
        %971 = vmatmul.bf16.gmra.mxu0 %v521
        %v972 = vpop.f32.mrf.mxu0
        %v973 = vadd.f32 %v914, %v972
        %v974 = vpop.f32.mrf.mxu0
        %v975 = vadd.f32 %v916, %v974
        %976 = vmatmul.bf16.gmra.mxu0 %v524
        %v977 = vpop.f32.mrf.mxu0
        %v978 = vadd.f32 %v919, %v977
        %v979 = vpop.f32.mrf.mxu0
        %v980 = vadd.f32 %v921, %v979
        %981 = vmatmul.bf16.gmra.mxu0 %v527
        %v982 = vpop.f32.mrf.mxu0
        %v983 = vadd.f32 %v924, %v982
        %v984 = vpop.f32.mrf.mxu0
        %v985 = vadd.f32 %v926, %v984
        %986 = vmatmul.bf16.gmra.mxu0 %v530
        %v987 = vpop.f32.mrf.mxu0
        %v988 = vadd.f32 %v929, %v987
        %v989 = vpop.f32.mrf.mxu0
        %v990 = vadd.f32 %v931, %v989
        %991 = vmatmul.bf16.gmra.mxu0 %v533
        %v992 = vpop.f32.mrf.mxu0
        %v993 = vadd.f32 %v934, %v992
        %v994 = vpop.f32.mrf.mxu0
        %v995 = vadd.f32 %v936, %v994
        %996 = vdwg.mxu0
        %997 = vmatpush.bf16.xpose.msra.mxu0 %v769
        %998 = vmatpush.bf16.xpose.msra.mxu0 %v766
        %999 = vmatpush.bf16.xpose.msra.mxu0 %v763
        %1000 = vmatpush.bf16.xpose.msra.mxu0 %v760
        %1001 = vmatpush.bf16.xpose.msra.mxu0 %v757
        %1002 = vmatpush.bf16.xpose.msra.mxu0 %v754
        %1003 = vmatpush.bf16.xpose.msra.mxu0 %v751
        %1004 = vmatpush.bf16.xpose.msra.mxu0 %v748
        %1005 = vmatmul.bf16.gmra.mxu0 %v504
        %v1006 = vpop.f32.mrf.mxu0
        %v1007 = vadd.f32 %v401, %v1006
        %v1008 = vpop.f32.mrf.mxu0
        %v1009 = vadd.f32 %v401, %v1008
        %1010 = vmatmul.bf16.gmra.mxu0 %v507
        %v1011 = vpop.f32.mrf.mxu0
        %v1012 = vadd.f32 %v401, %v1011
        %v1013 = vpop.f32.mrf.mxu0
        %v1014 = vadd.f32 %v401, %v1013
        %1015 = vmatmul.bf16.gmra.mxu0 %v510
        %v1016 = vpop.f32.mrf.mxu0
        %v1017 = vadd.f32 %v401, %v1016
        %v1018 = vpop.f32.mrf.mxu0
        %v1019 = vadd.f32 %v401, %v1018
        %1020 = vmatmul.bf16.gmra.mxu0 %v513
        %v1021 = vpop.f32.mrf.mxu0
        %v1022 = vadd.f32 %v401, %v1021
        %v1023 = vpop.f32.mrf.mxu0
        %v1024 = vadd.f32 %v401, %v1023
        %1025 = vmatmul.bf16.gmra.mxu0 %v516
        %v1026 = vpop.f32.mrf.mxu0
        %v1027 = vadd.f32 %v401, %v1026
        %v1028 = vpop.f32.mrf.mxu0
        %v1029 = vadd.f32 %v401, %v1028
        %1030 = vmatmul.bf16.gmra.mxu0 %v519
        %v1031 = vpop.f32.mrf.mxu0
        %v1032 = vadd.f32 %v401, %v1031
        %v1033 = vpop.f32.mrf.mxu0
        %v1034 = vadd.f32 %v401, %v1033
        %1035 = vmatmul.bf16.gmra.mxu0 %v522
        %v1036 = vpop.f32.mrf.mxu0
        %v1037 = vadd.f32 %v401, %v1036
        %v1038 = vpop.f32.mrf.mxu0
        %v1039 = vadd.f32 %v401, %v1038
        %1040 = vmatmul.bf16.gmra.mxu0 %v525
        %v1041 = vpop.f32.mrf.mxu0
        %v1042 = vadd.f32 %v401, %v1041
        %v1043 = vpop.f32.mrf.mxu0
        %v1044 = vadd.f32 %v401, %v1043
        %1045 = vmatmul.bf16.gmra.mxu0 %v528
        %v1046 = vpop.f32.mrf.mxu0
        %v1047 = vadd.f32 %v401, %v1046
        %v1048 = vpop.f32.mrf.mxu0
        %v1049 = vadd.f32 %v401, %v1048
        %1050 = vmatmul.bf16.gmra.mxu0 %v531
        %v1051 = vpop.f32.mrf.mxu0
        %v1052 = vadd.f32 %v401, %v1051
        %v1053 = vpop.f32.mrf.mxu0
        %v1054 = vadd.f32 %v401, %v1053
        %1055 = vdwg.mxu0
        %1056 = vmatpush.bf16.xpose.msra.mxu0 %v770
        %1057 = vmatpush.bf16.xpose.msra.mxu0 %v767
        %1058 = vmatpush.bf16.xpose.msra.mxu0 %v764
        %1059 = vmatpush.bf16.xpose.msra.mxu0 %v761
        %1060 = vmatpush.bf16.xpose.msra.mxu0 %v758
        %1061 = vmatpush.bf16.xpose.msra.mxu0 %v755
        %1062 = vmatpush.bf16.xpose.msra.mxu0 %v752
        %1063 = vmatpush.bf16.xpose.msra.mxu0 %v749
        %1064 = vmatmul.bf16.gmra.mxu0 %v505
        %v1065 = vpop.f32.mrf.mxu0
        %v1066 = vadd.f32 %v1007, %v1065
        %v1067 = vpop.f32.mrf.mxu0
        %v1068 = vadd.f32 %v1009, %v1067
        %1069 = vmatmul.bf16.gmra.mxu0 %v508
        %v1070 = vpop.f32.mrf.mxu0
        %v1071 = vadd.f32 %v1012, %v1070
        %v1072 = vpop.f32.mrf.mxu0
        %v1073 = vadd.f32 %v1014, %v1072
        %1074 = vmatmul.bf16.gmra.mxu0 %v511
        %v1075 = vpop.f32.mrf.mxu0
        %v1076 = vadd.f32 %v1017, %v1075
        %v1077 = vpop.f32.mrf.mxu0
        %v1078 = vadd.f32 %v1019, %v1077
        %1079 = vmatmul.bf16.gmra.mxu0 %v514
        %v1080 = vpop.f32.mrf.mxu0
        %v1081 = vadd.f32 %v1022, %v1080
        %v1082 = vpop.f32.mrf.mxu0
        %v1083 = vadd.f32 %v1024, %v1082
        %1084 = vmatmul.bf16.gmra.mxu0 %v517
        %v1085 = vpop.f32.mrf.mxu0
        %v1086 = vadd.f32 %v1027, %v1085
        %v1087 = vpop.f32.mrf.mxu0
        %v1088 = vadd.f32 %v1029, %v1087
        %1089 = vmatmul.bf16.gmra.mxu0 %v520
        %v1090 = vpop.f32.mrf.mxu0
        %v1091 = vadd.f32 %v1032, %v1090
        %v1092 = vpop.f32.mrf.mxu0
        %v1093 = vadd.f32 %v1034, %v1092
        %1094 = vmatmul.bf16.gmra.mxu0 %v523
        %v1095 = vpop.f32.mrf.mxu0
        %v1096 = vadd.f32 %v1037, %v1095
        %v1097 = vpop.f32.mrf.mxu0
        %v1098 = vadd.f32 %v1039, %v1097
        %1099 = vmatmul.bf16.gmra.mxu0 %v526
        %v1100 = vpop.f32.mrf.mxu0
        %v1101 = vadd.f32 %v1042, %v1100
        %v1102 = vpop.f32.mrf.mxu0
        %v1103 = vadd.f32 %v1044, %v1102
        %1104 = vmatmul.bf16.gmra.mxu0 %v529
        %v1105 = vpop.f32.mrf.mxu0
        %v1106 = vadd.f32 %v1047, %v1105
        %v1107 = vpop.f32.mrf.mxu0
        %v1108 = vadd.f32 %v1049, %v1107
        %1109 = vmatmul.bf16.gmra.mxu0 %v532
        %v1110 = vpop.f32.mrf.mxu0
        %v1111 = vadd.f32 %v1052, %v1110
        %v1112 = vpop.f32.mrf.mxu0
        %v1113 = vadd.f32 %v1054, %v1112
        %1114 = vdwg.mxu0
        %1115 = vmatpush.bf16.xpose.msra.mxu0 %v771
        %1116 = vmatpush.bf16.xpose.msra.mxu0 %v768
        %1117 = vmatpush.bf16.xpose.msra.mxu0 %v765
        %1118 = vmatpush.bf16.xpose.msra.mxu0 %v762
        %1119 = vmatpush.bf16.xpose.msra.mxu0 %v759
        %1120 = vmatpush.bf16.xpose.msra.mxu0 %v756
        %1121 = vmatpush.bf16.xpose.msra.mxu0 %v753
        %1122 = vmatpush.bf16.xpose.msra.mxu0 %v750
        %1123 = vmatmul.bf16.gmra.mxu0 %v506
        %v1124 = vpop.f32.mrf.mxu0
        %v1125 = vadd.f32 %v1066, %v1124
        %v1126 = vpop.f32.mrf.mxu0
        %v1127 = vadd.f32 %v1068, %v1126
        %1128 = vmatmul.bf16.gmra.mxu0 %v509
        %v1129 = vpop.f32.mrf.mxu0
        %v1130 = vadd.f32 %v1071, %v1129
        %v1131 = vpop.f32.mrf.mxu0
        %v1132 = vadd.f32 %v1073, %v1131
        %1133 = vmatmul.bf16.gmra.mxu0 %v512
        %v1134 = vpop.f32.mrf.mxu0
        %v1135 = vadd.f32 %v1076, %v1134
        %v1136 = vpop.f32.mrf.mxu0
        %v1137 = vadd.f32 %v1078, %v1136
        %1138 = vmatmul.bf16.gmra.mxu0 %v515
        %v1139 = vpop.f32.mrf.mxu0
        %v1140 = vadd.f32 %v1081, %v1139
        %v1141 = vpop.f32.mrf.mxu0
        %v1142 = vadd.f32 %v1083, %v1141
        %1143 = vmatmul.bf16.gmra.mxu0 %v518
        %v1144 = vpop.f32.mrf.mxu0
        %v1145 = vadd.f32 %v1086, %v1144
        %v1146 = vpop.f32.mrf.mxu0
        %v1147 = vadd.f32 %v1088, %v1146
        %1148 = vmatmul.bf16.gmra.mxu0 %v521
        %v1149 = vpop.f32.mrf.mxu0
        %v1150 = vadd.f32 %v1091, %v1149
        %v1151 = vpop.f32.mrf.mxu0
        %v1152 = vadd.f32 %v1093, %v1151
        %1153 = vmatmul.bf16.gmra.mxu0 %v524
        %v1154 = vpop.f32.mrf.mxu0
        %v1155 = vadd.f32 %v1096, %v1154
        %v1156 = vpop.f32.mrf.mxu0
        %v1157 = vadd.f32 %v1098, %v1156
        %1158 = vmatmul.bf16.gmra.mxu0 %v527
        %v1159 = vpop.f32.mrf.mxu0
        %v1160 = vadd.f32 %v1101, %v1159
        %v1161 = vpop.f32.mrf.mxu0
        %v1162 = vadd.f32 %v1103, %v1161
        %1163 = vmatmul.bf16.gmra.mxu0 %v530
        %v1164 = vpop.f32.mrf.mxu0
        %v1165 = vadd.f32 %v1106, %v1164
        %v1166 = vpop.f32.mrf.mxu0
        %v1167 = vadd.f32 %v1108, %v1166
        %1168 = vmatmul.bf16.gmra.mxu0 %v533
        %v1169 = vpop.f32.mrf.mxu0
        %v1170 = vadd.f32 %v1111, %v1169
        %v1171 = vpop.f32.mrf.mxu0
        %v1172 = vadd.f32 %v1113, %v1171
        %1173 = vdwg.mxu0
        %v1174 = vld [vmem:[%s3] sm:$0x3]
        %v1176 = vperm.slane %v1174, 0
        %v1177 = vperm.slane %v1174, 1
        %v1180 = vmul.f32 %v948, %v1176
        %v1181 = vmul.f32 %v1125, %v1177
        %v1182 = vmul.f32 %v950, %v1176
        %v1183 = vmul.f32 %v1127, %v1177
        %v1184 = vmul.f32 %v953, %v1176
        %v1185 = vmul.f32 %v1130, %v1177
        %v1186 = vmul.f32 %v955, %v1176
        %v1187 = vmul.f32 %v1132, %v1177
        %v1188 = vmul.f32 %v958, %v1176
        %v1189 = vmul.f32 %v1135, %v1177
        %v1190 = vmul.f32 %v960, %v1176
        %v1191 = vmul.f32 %v1137, %v1177
        %v1192 = vmul.f32 %v963, %v1176
        %v1193 = vmul.f32 %v1140, %v1177
        %v1194 = vmul.f32 %v965, %v1176
        %v1195 = vmul.f32 %v1142, %v1177
        %v1196 = vmul.f32 %v968, %v1176
        %v1197 = vmul.f32 %v1145, %v1177
        %v1198 = vmul.f32 %v970, %v1176
        %v1199 = vmul.f32 %v1147, %v1177
        %v1200 = vmul.f32 %v973, %v1176
        %v1201 = vmul.f32 %v1150, %v1177
        %v1202 = vmul.f32 %v975, %v1176
        %v1203 = vmul.f32 %v1152, %v1177
        %v1204 = vmul.f32 %v978, %v1176
        %v1205 = vmul.f32 %v1155, %v1177
        %v1206 = vmul.f32 %v980, %v1176
        %v1207 = vmul.f32 %v1157, %v1177
        %v1208 = vmul.f32 %v983, %v1176
        %v1209 = vmul.f32 %v1160, %v1177
        %v1210 = vmul.f32 %v985, %v1176
        %v1211 = vmul.f32 %v1162, %v1177
        %v1212 = vmul.f32 %v988, %v1176
        %v1213 = vmul.f32 %v1165, %v1177
        %v1214 = vmul.f32 %v990, %v1176
        %v1215 = vmul.f32 %v1167, %v1177
        %v1216 = vmul.f32 %v993, %v1176
        %v1217 = vmul.f32 %v1170, %v1177
        %v1218 = vmul.f32 %v995, %v1176
        %v1219 = vmul.f32 %v1172, %v1177
        %1220 = vst [vmem:[%s287] sm:$0xff] %v1180
        %1221 = vst [vmem:[%s287 + $0x8] sm:$0xff] %v1181
        %1222 = vst [vmem:[%s287 + $0x10] sm:$0xff] %v1182
        %1223 = vst [vmem:[%s287 + $0x18] sm:$0xff] %v1183
        %1224 = vst [vmem:[%s287 + $0x20] sm:$0xff] %v1184
        %1225 = vst [vmem:[%s287 + $0x28] sm:$0xff] %v1185
        %1226 = vst [vmem:[%s287 + $0x30] sm:$0xff] %v1186
        %1227 = vst [vmem:[%s287 + $0x38] sm:$0xff] %v1187
        %1228 = vst [vmem:[%s287 + $0x40] sm:$0xff] %v1188
        %1229 = vst [vmem:[%s287 + $0x48] sm:$0xff] %v1189
        %1230 = vst [vmem:[%s287 + $0x50] sm:$0xff] %v1190
        %1231 = vst [vmem:[%s287 + $0x58] sm:$0xff] %v1191
        %1232 = vst [vmem:[%s287 + $0x60] sm:$0xff] %v1192
        %1233 = vst [vmem:[%s287 + $0x68] sm:$0xff] %v1193
        %1234 = vst [vmem:[%s287 + $0x70] sm:$0xff] %v1194
        %1235 = vst [vmem:[%s287 + $0x78] sm:$0xff] %v1195
        %1236 = vst [vmem:[%s287 + $0x80] sm:$0xff] %v1196
        %1237 = vst [vmem:[%s287 + $0x88] sm:$0xff] %v1197
        %1238 = vst [vmem:[%s287 + $0x90] sm:$0xff] %v1198
        %1239 = vst [vmem:[%s287 + $0x98] sm:$0xff] %v1199
        %1240 = vst [vmem:[%s287 + $0xa0] sm:$0xff] %v1200
        %1241 = vst [vmem:[%s287 + $0xa8] sm:$0xff] %v1201
        %1242 = vst [vmem:[%s287 + $0xb0] sm:$0xff] %v1202
        %1243 = vst [vmem:[%s287 + $0xb8] sm:$0xff] %v1203
        %1244 = vst [vmem:[%s287 + $0xc0] sm:$0xff] %v1204
        %1245 = vst [vmem:[%s287 + $0xc8] sm:$0xff] %v1205
        %1246 = vst [vmem:[%s287 + $0xd0] sm:$0xff] %v1206
        %1247 = vst [vmem:[%s287 + $0xd8] sm:$0xff] %v1207
        %1248 = vst [vmem:[%s287 + $0xe0] sm:$0xff] %v1208
        %1249 = vst [vmem:[%s287 + $0xe8] sm:$0xff] %v1209
        %1250 = vst [vmem:[%s287 + $0xf0] sm:$0xff] %v1210
        %1251 = vst [vmem:[%s287 + $0xf8] sm:$0xff] %v1211
        %1252 = vst [vmem:[%s287 + $0x100] sm:$0xff] %v1212
        %1253 = vst [vmem:[%s287 + $0x108] sm:$0xff] %v1213
        %1254 = vst [vmem:[%s287 + $0x110] sm:$0xff] %v1214
        %1255 = vst [vmem:[%s287 + $0x118] sm:$0xff] %v1215
        %1256 = vst [vmem:[%s287 + $0x120] sm:$0xff] %v1216
        %1257 = vst [vmem:[%s287 + $0x128] sm:$0xff] %v1217
        %1258 = vst [vmem:[%s287 + $0x130] sm:$0xff] %v1218
        %1259 = vst [vmem:[%s287 + $0x138] sm:$0xff] %v1219
        %s1260 = sand.u32 %s149, 1
        %s1261 = scalar_lea.sflag [#allocation4], %s1260
        %s1262 = sand.u32 %s149, 1
        %s1263 = smul.addr %s1262, 320
        %s1264 = scalar_lea.vmem [#allocation8], %s1263
        // Predicated region
        $region49: #{tpu_custom_call.1} parent=35 // pred_check
          %p1265 = pneg %p159
        $region50: #{tpu_custom_call.1} parent=35 // pred_check_branch
          %1267 = sbr.rel (%p1265) target = $region52
        $region51: #{tpu_custom_call.1} parent=35 // pred_region
          %s1268 = smul.u32 20, %s27
          %s1269 = smul.u32 2, %s28
          %1271 = vsyncadd %s1261, 0
          %s1272 = smul.addr %s1268, 2
          %s1273 = sadd.s32 %s1269, %s1272
          %s1274 = smul.addr %s1273, 8
          %s1275 = scalar_lea.hbm %s4, %s1274
          %s1276 = sshll.u32 %s1264, 4
          %s1277 = int_to_ptr.vmem [resolvable:$true] %s1276
          %s1278 = sshll.u32 %s1275, 4
          %s1279 = int_to_ptr.hbm [resolvable:$true] %s1278
          %1284 = dma.vmem_to_hbm [thread:$0]  %s1277, 5120, %s1279, %s1261, 256, 256, 16
        $region52: #{tpu_custom_call.1} parent=35 // pred_fallthru
          _
      $region36: #{tpu_custom_call.1} parent=5 // pred_fallthru
        _
      %p1285 = scmp.le.s32.totalorder 2, %s17
      // Predicated region
      $region53: #{tpu_custom_call.1} parent=5 // pred_check
        %p1286 = pneg %p1285
      $region54: #{tpu_custom_call.1} parent=5 // pred_check_branch
        %1288 = sbr.rel (%p1286) target = $region56
      $region55: #{tpu_custom_call.1} parent=5 // pred_region
        %s1289 = ssub.s32 %s17, 2
        // Predicated region
        $region57: #{tpu_custom_call.1} parent=55 // pred_check
          %p1290 = pneg %p165
        $region58: #{tpu_custom_call.1} parent=55 // pred_check_branch
          %1292 = sbr.rel (%p1290) target = $region60
        $region59: #{tpu_custom_call.1} parent=55 // pred_region
          %s1293 = sand.u32 %s150, 1
          %s1294 = scalar_lea.sflag [#allocation4], %s1293
          %s1295 = sand.u32 %s150, 1
          %s1296 = smul.addr %s1295, 320
          %s1297 = scalar_lea.vmem [#allocation8], %s1296
          %1299 = dma.done %s1294, 5120
        $region60: #{tpu_custom_call.1} parent=55 // pred_fallthru
          _
      $region56: #{tpu_custom_call.1} parent=5 // pred_fallthru
        _
    $region6: #{tpu_custom_call.1} parent=1 // loop_footer
      %s21 = sadd.s32 1, %s17
    $region7: #{tpu_custom_call.1} parent=1 // loop_footer_branch
      %16 = sbr.rel target = $region3
    $region8: #{tpu_custom_call.1} parent=1 // loop_exit
      _
    %1300 = vsyncpa [#allocation3], 1
    %s1301 = scalar_lea.sflag [#allocation3], 1
    %1302 = vsyncpa %s1301, 1
    %1303 = vsyncpa [#allocation6], 1
    %1304 = vsyncpa [#allocation4], 1
    %s1305 = scalar_lea.sflag [#allocation4], 1
    %1306 = vsyncpa %s1305, 1

</llo_original>
